<compile_context>
chip_gen: v5e
topology: v5e:2x2
jax: 0.10.0
libtpu: 0.0.40
codegen_flags: <defaults>
</compile_context>

<pallas_src>
import jax
import jax.numpy as jnp
import numpy as np
from jax.experimental import pallas as pl
from jax.experimental.pallas import tpu as pltpu

_MIB = 1024 * 1024


# --------------------------------------------------------------------------
# Small host-side helpers (shape math, pooling matrices, divisors).
# --------------------------------------------------------------------------
def _pair(v):
    if isinstance(v, (tuple, list)):
        if len(v) == 1:
            return (int(v[0]), int(v[0]))
        return (int(v[0]), int(v[1]))
    return (int(v), int(v))


def _out_size(in_size, k, s, p, ceil_mode):
    num = in_size + 2 * p - k
    if ceil_mode:
        out = -(-num // s) + 1
        # Skip the last window if it would start in the right/bottom padding.
        if (out - 1) * s >= in_size + p:
            out -= 1
    else:
        out = num // s + 1
    return max(out, 0)


def _pool_matrix(out_size, in_size, k, s, p):
    """(out_size, in_size) 0/1 matrix over the UNPADDED axis (windows clipped)."""
    m = np.zeros((out_size, in_size), dtype=np.float64)
    for i in range(out_size):
        lo = max(i * s - p, 0)
        hi = min(i * s - p + k, in_size)
        if hi > lo:
            m[i, lo:hi] = 1.0
    return m


def _axis_divisors(in_size, k, s, p, out_size, count_include_pad):
    """Per-output divisor along one axis (PyTorch semantics; rank-1 separable)."""
    d = np.zeros(out_size, dtype=np.float64)
    for i in range(out_size):
        start = i * s - p
        end = min(start + k, in_size + p)
        if count_include_pad:
            d[i] = end - start
        else:
            d[i] = min(end, in_size) - max(start, 0)
    # Guard (unreachable for valid PyTorch configs where pad <= k/2).
    return np.where(d == 0.0, 1.0, d)


def _rup(x, m):
    return ((int(x) + m - 1) // m) * m


# --------------------------------------------------------------------------
# VMEM budgeting (generation-aware) and plane-block selection.
# --------------------------------------------------------------------------
def _tpu_vmem_and_cores():
    vmem_cap = 128 * _MIB
    num_cores = None
    try:
        info = pltpu.get_tpu_info()
        vmem_cap = int(getattr(info, "vmem_capacity_bytes", vmem_cap))
        for name in ("num_tensorcores", "tensorcore_count", "num_cores", "core_count"):
            v = getattr(info, name, None)
            if v:
                num_cores = int(v)
                break
    except Exception:
        pass
    if num_cores is None:
        # v7x-class chips expose 64 MiB VMEM per TensorCore and have 2 TCs.
        num_cores = 2 if vmem_cap <= 64 * _MIB else 1
    return vmem_cap, num_cores


def _per_plane_bytes_fused(H, W, H_out, W_out, in_item, out_item):
    in_b = _rup(H * W, 128) * in_item
    acc_b = _rup(H_out * W_out, 128) * 4
    out_b = _rup(H_out * W_out, 128) * out_item
    return 2 * in_b + 2 * out_b + acc_b


def _per_plane_bytes_separable(H, W, H_out, W_out, in_item, out_item):
    in_b = _rup(H, 8) * _rup(W, 128) * in_item
    y_b = _rup(H, 8) * _rup(W_out, 128) * 4
    yt_b = _rup(W_out, 8) * _rup(H, 128) * 4
    t_b = _rup(W_out, 8) * _rup(H_out, 128) * 4
    z_b = _rup(H_out, 8) * _rup(W_out, 128) * 4
    out_b = _rup(H_out * W_out, 128) * out_item
    return 2 * in_b + 2 * out_b + (y_b + yt_b + t_b + z_b)


def _choose_block(nc, per_plane_bytes, budget_bytes, num_cores):
    """Largest divisor of nc whose per-step VMEM footprint fits the budget.

    Multi-TensorCore chips (v7x): keep >= 2 grid steps per core so each core
    gets pipelined work.  Single-core chips (v5e/v6e): the grid is a serial
    loop, so take the biggest block that fits (fewer, larger DMAs).
    """
    cap = max(1, int(budget_bytes // max(per_plane_bytes, 1)))
    cap = min(cap, nc)
    if num_cores >= 2 and nc >= 2 * num_cores:
        cap = min(cap, nc // (2 * num_cores))
    cap = max(cap, 1)
    best = 1
    for d in range(1, cap + 1):
        if nc % d == 0:
            best = d
    return best


# --------------------------------------------------------------------------
# Kernels.
# --------------------------------------------------------------------------
def _make_fused_kernel():
    # refs: x (1, B, H*W), kmat (H*W, HW_out), out (1, B, HW_out)
    def kernel(x_ref, k_ref, o_ref):
        x = x_ref[0]                                              # (B, H*W)
        z = jnp.dot(x, k_ref[...], preferred_element_type=jnp.float32)
        o_ref[0] = z.astype(o_ref.dtype)                          # lane-dense store
    return kernel


def _make_separable_kernel(B, H, W, H_out, W_out, compute_dtype):
    # refs: x (1, B, H, W), a_w_t (W, W_out), a_h_t (H, H_out), out (1, B, HW_out)
    def kernel(x_ref, awt_ref, aht_ref, o_ref):
        x = x_ref[0]                                              # (B, H, W)
        # W-pooling: one matmul with the plane batch folded into M = B*H.
        y = jnp.dot(x.reshape(B * H, W), awt_ref[...],
                    preferred_element_type=jnp.float32)           # (B*H, W_out) f32
        # Batched minor-dim transpose of the (smaller) intermediate, then
        # H-pooling as a single 2-D matmul with M = B*W_out.
        yt = jnp.swapaxes(y.reshape(B, H, W_out), 1, 2)           # (B, W_out, H)
        yt = yt.astype(compute_dtype)                             # bf16 MXU pipe on bf16 inputs
        t = jnp.dot(yt.reshape(B * W_out, H), aht_ref[...],
                    preferred_element_type=jnp.float32)           # (B*W_out, H_out)
        z = jnp.swapaxes(t.reshape(B, W_out, H_out), 1, 2)        # (B, H_out, W_out)
        o_ref[0] = z.reshape(B, H_out * W_out).astype(o_ref.dtype)  # lane-dense store
    return kernel


# --------------------------------------------------------------------------
# Wrapper (PyTorch F.avg_pool2d semantics, NCHW).
# --------------------------------------------------------------------------
def avg_pool2d_pallas(x, kernel_size, stride=None, padding=0, ceil_mode=False,
                      count_include_pad=True, divisor_override=None):
    kh, kw = _pair(kernel_size)
    sh, sw = _pair(stride) if stride is not None else (kh, kw)
    ph, pw = _pair(padding)
    if divisor_override is not None and int(divisor_override) == 0:
        raise ValueError("divisor must be not zero")

    squeeze = (x.ndim == 3)
    if squeeze:
        x = x[None]
    N, C, H, W = x.shape
    orig_dtype = x.dtype

    H_out = _out_size(H, kh, sh, ph, ceil_mode)
    W_out = _out_size(W, kw, sw, pw, ceil_mode)

    if orig_dtype in (jnp.float32, jnp.bfloat16):
        compute_dtype = orig_dtype
        kernel_out_dtype = orig_dtype
    else:
        # e.g. float16 / float64: compute in f32, cast back to the input dtype.
        compute_dtype = jnp.float32
        kernel_out_dtype = jnp.float32
        x = x.astype(jnp.float32)

    if N * C == 0 or H_out <= 0 or W_out <= 0:
        out = jnp.zeros((N, C, max(H_out, 0), max(W_out, 0)), orig_dtype)
        return out[0] if squeeze else out

    NC = N * C
    in_item = np.dtype(compute_dtype).itemsize
    out_item = np.dtype(kernel_out_dtype).itemsize

    # Pooling matrices over the UNPADDED extents (windows clipped to valid
    # range -> no wrapper-side pad pass) with the rank-1-separable divisor
    # folded in (covers count_include_pad, ceil_mode, divisor_override).
    a_h = _pool_matrix(H_out, H, kh, sh, ph)                      # (H_out, H)
    a_w = _pool_matrix(W_out, W, kw, sw, pw)                      # (W_out, W)
    if divisor_override is not None:
        h_div = np.full(H_out, float(divisor_override))
        w_div = np.ones(W_out)
    else:
        h_div = _axis_divisors(H, kh, sh, ph, H_out, count_include_pad)
        w_div = _axis_divisors(W, kw, sw, pw, W_out, count_include_pad)
    a_h_scaled = a_h / h_div[:, None]
    a_w_scaled = a_w / w_div[:, None]

    # Hardware-aware VMEM budgets.
    vmem_cap, num_cores = _tpu_vmem_and_cores()
    if vmem_cap <= 64 * _MIB:           # v7x-class: leave headroom for scratch
        vmem_limit = min(44 * _MIB, int(vmem_cap * 0.70))
    else:                               # v5e / v6e: 128 MiB physical VMEM
        vmem_limit = 80 * _MIB
    footprint_budget = int(vmem_limit * 0.70)

    # Path selection: fused single-matmul (lane-dense in & out) for small
    # feature maps; separable two-matmul for large ones (keeps FLOPs low).
    kron_bytes = H * W * H_out * W_out * in_item
    fused = (kron_bytes <= 1 * _MIB) and (H * W <= 4096)

    if fused:
        kmat = jnp.asarray(np.kron(a_h_scaled, a_w_scaled).T,    # (H*W, HW_out)
                           dtype=compute_dtype)
        const_bytes = 2 * _rup(H * W, 8) * _rup(H_out * W_out, 128) * in_item
        per_plane = _per_plane_bytes_fused(H, W, H_out, W_out, in_item, out_item)
        budget = max(footprint_budget - const_bytes, per_plane)
        B = _choose_block(NC, per_plane, budget, num_cores)
        NB = NC // B

        x_in = x.reshape(NB, B, H * W)                           # metadata-only
        in_specs = [
            pl.BlockSpec((1, B, H * W), lambda i: (i, 0, 0)),
            pl.BlockSpec((H * W, H_out * W_out), lambda i: (0, 0)),
        ]
        operands = [x_in, kmat]
        kernel = _make_fused_kernel()
    else:
        # TODO(synk): planes too large for a single VMEM block (e.g. >1k per side
        # in f32) would additionally need spatial tiling of H.
        a_w_t = jnp.asarray(a_w_scaled.T, dtype=compute_dtype)   # (W, W_out)
        a_h_t = jnp.asarray(a_h_scaled.T, dtype=compute_dtype)   # (H, H_out)
        const_bytes = 2 * (_rup(W, 8) * _rup(W_out, 128)
                           + _rup(H, 8) * _rup(H_out, 128)) * in_item
        per_plane = _per_plane_bytes_separable(H, W, H_out, W_out, in_item, out_item)
        budget = max(footprint_budget - const_bytes, per_plane)
        B = _choose_block(NC, per_plane, budget, num_cores)
        NB = NC // B

        x_in = x.reshape(NB, B, H, W)                            # metadata-only
        in_specs = [
            pl.BlockSpec((1, B, H, W), lambda i: (i, 0, 0, 0)),
            pl.BlockSpec((W, W_out), lambda i: (0, 0)),
            pl.BlockSpec((H, H_out), lambda i: (0, 0)),
        ]
        operands = [x_in, a_w_t, a_h_t]
        kernel = _make_separable_kernel(B, H, W, H_out, W_out, compute_dtype)

    out3 = pl.pallas_call(
        kernel,
        out_shape=jax.ShapeDtypeStruct((NB, B, H_out * W_out), kernel_out_dtype),
        grid_spec=pltpu.PrefetchScalarGridSpec(
            num_scalar_prefetch=0,
            grid=(NB,),
            in_specs=in_specs,
            out_specs=pl.BlockSpec((1, B, H_out * W_out), lambda i: (i, 0, 0)),
        ),
        compiler_params=pltpu.CompilerParams(
            dimension_semantics=("parallel",),
            vmem_limit_bytes=vmem_limit,
        ),
    )(*operands)

    out = out3.reshape(N, C, H_out, W_out)                       # metadata-only
    if out.dtype != orig_dtype:
        out = out.astype(orig_dtype)
    return out[0] if squeeze else out


# --------------------------------------------------------------------------
# Pure numpy reference matching PyTorch F.avg_pool2d semantics.
# --------------------------------------------------------------------------
def _reference_avg_pool2d(x, kernel_size, stride, padding, ceil_mode,
                          count_include_pad, divisor_override):
    kh, kw = _pair(kernel_size)
    sh, sw = _pair(stride) if stride is not None else (kh, kw)
    ph, pw = _pair(padding)
    x = np.asarray(x, dtype=np.float32)
    N, C, H, W = x.shape
    H_out = _out_size(H, kh, sh, ph, ceil_mode)
    W_out = _out_size(W, kw, sw, pw, ceil_mode)
    out = np.zeros((N, C, H_out, W_out), dtype=np.float32)
    for oh in range(H_out):
        for ow in range(W_out):
            hstart, wstart = oh * sh - ph, ow * sw - pw
            hend, wend = min(hstart + kh, H + ph), min(wstart + kw, W + pw)
            pool_size = (hend - hstart) * (wend - wstart)
            hs, ws = max(hstart, 0), max(wstart, 0)
            he, we = min(hend, H), min(wend, W)
            if divisor_override is not None:
                d = float(divisor_override)
            elif count_include_pad:
                d = float(pool_size)
            else:
                d = float((he - hs) * (we - ws))
            out[:, :, oh, ow] = x[:, :, hs:he, ws:we].sum(axis=(2, 3)) / d
    return out


if __name__ == "__main__":
    key = jax.random.PRNGKey(0)
    x = jax.random.normal(key, (2, 4, 16, 16), dtype=jnp.float32)

    # nn.AvgPool2d(3, stride=2, padding=1) -> fused (lane-dense) path.
    out = jax.block_until_ready(
        avg_pool2d_pallas(x, kernel_size=3, stride=2, padding=1))
    ref = _reference_avg_pool2d(np.asarray(x), 3, 2, 1, False, True, None)
    assert out.shape == ref.shape, (out.shape, ref.shape)
    np.testing.assert_allclose(np.asarray(out), ref, rtol=1e-5, atol=1e-5)

    # Non-uniform divisors: count_include_pad=False with padding.
    out2 = jax.block_until_ready(
        avg_pool2d_pallas(x, kernel_size=3, stride=2, padding=1,
                          count_include_pad=False))
    ref2 = _reference_avg_pool2d(np.asarray(x), 3, 2, 1, False, False, None)
    np.testing.assert_allclose(np.asarray(out2), ref2, rtol=1e-5, atol=1e-5)

    # Larger feature map + ceil_mode -> separable two-matmul path.
    x3 = jax.random.normal(jax.random.PRNGKey(1), (2, 4, 40, 40), dtype=jnp.float32)
    out3 = jax.block_until_ready(
        avg_pool2d_pallas(x3, kernel_size=3, stride=3, padding=0, ceil_mode=True))
    ref3 = _reference_avg_pool2d(np.asarray(x3), 3, 3, 0, True, True, None)
    assert out3.shape == ref3.shape, (out3.shape, ref3.shape)
    np.testing.assert_allclose(np.asarray(out3), ref3, rtol=1e-5, atol=1e-5)

    # bf16 input path (bf16 MXU matmuls, divisors folded in bf16).
    xb = x.astype(jnp.bfloat16)
    outb = jax.block_until_ready(
        avg_pool2d_pallas(xb, kernel_size=3, stride=2, padding=1))
    refb = _reference_avg_pool2d(np.asarray(xb).astype(np.float32),
                                 3, 2, 1, False, True, None)
    assert outb.dtype == jnp.bfloat16
    np.testing.assert_allclose(np.asarray(outb).astype(np.float32), refb,
                               rtol=3e-2, atol=3e-2)

    print("KERNEL_OK")
</pallas_src>

<mosaic_0001>
module attributes {stable_mosaic.version = 11 : i64} {
  func.func @kernel(%arg0: i32, %arg1: memref<1x8x256xf32, #tpu.memory_space<vmem>>, %arg2: memref<256x64xf32, #tpu.memory_space<vmem>>, %arg3: memref<1x8x64xf32, #tpu.memory_space<vmem>>) attributes {dimension_semantics = [#tpu.dimension_semantics<parallel>], iteration_bounds = array<i64: 1>, scalar_prefetch = 0 : i64, scratch_operands = 0 : i64, tpu.core_type = #tpu.core_type<tc>, window_params = [{transform_indices = @transform_0, window_bounds = array<i64: 1, 8, 256>}, {pipeline_mode = #tpu.pipeline_mode<synchronous>, transform_indices = @transform_1, window_bounds = array<i64: 256, 64>}, {transform_indices = @transform_2, window_bounds = array<i64: 1, 8, 64>}]} {
    %c0 = arith.constant 0 : index
    %c0_0 = arith.constant 0 : index
    %c0_1 = arith.constant 0 : index
    %0 = vector.load %arg1[%c0, %c0_0, %c0_1] : memref<1x8x256xf32, #tpu.memory_space<vmem>>, vector<1x8x256xf32>
    %1 = vector.shape_cast %0 : vector<1x8x256xf32> to vector<8x256xf32>
    %c0_2 = arith.constant 0 : index
    %c0_3 = arith.constant 0 : index
    %2 = vector.load %arg2[%c0_2, %c0_3] : memref<256x64xf32, #tpu.memory_space<vmem>>, vector<256x64xf32>
    %cst = arith.constant dense<0.000000e+00> : vector<8x64xf32>
    %3 = tpu.matmul %1, %2, %cst {dimension_numbers = #tpu.dot_dimension_numbers<[1], [0], [0], [1], [0, 0, 1, 1], [], []>} : vector<8x256xf32>, vector<256x64xf32>, vector<8x64xf32> -> vector<8x64xf32>
    %c0_4 = arith.constant 0 : index
    %c0_5 = arith.constant 0 : index
    %c0_6 = arith.constant 0 : index
    %4 = vector.load %arg3[%c0_4, %c0_5, %c0_6] : memref<1x8x64xf32, #tpu.memory_space<vmem>>, vector<1x8x64xf32>
    %5 = vector.shape_cast %4 : vector<1x8x64xf32> to vector<8x64xf32>
    %6 = vector.shape_cast %3 : vector<8x64xf32> to vector<1x8x64xf32>
    tpu.vector_store %arg3[%c0_4, %c0_5, %c0_6], %6 {strides = array<i32>} : memref<1x8x64xf32, #tpu.memory_space<vmem>>, vector<1x8x64xf32>,
    return
  }
  func.func @transform_0(%arg0: i32) -> (i32, i32, i32) {
    %c0_i32 = arith.constant 0 : i32
    %c0_i32_0 = arith.constant 0 : i32
    %c0_i32_1 = arith.constant 0 : i32
    return %arg0, %c0_i32, %c0_i32_0 : i32, i32, i32
  }
  func.func @transform_1(%arg0: i32) -> (i32, i32) {
    %c0_i32 = arith.constant 0 : i32
    %c0_i32_0 = arith.constant 0 : i32
    %c0_i32_1 = arith.constant 0 : i32
    return %c0_i32, %c0_i32_0 : i32, i32
  }
  func.func @transform_2(%arg0: i32) -> (i32, i32, i32) {
    %c0_i32 = arith.constant 0 : i32
    %c0_i32_0 = arith.constant 0 : i32
    %c0_i32_1 = arith.constant 0 : i32
    return %arg0, %c0_i32, %c0_i32_0 : i32, i32, i32
  }
}

</mosaic_0001>

<llo_original>
// kernel: tpu_custom_call.1
$region0: #{tpu_custom_call.1}
  #allocation0 [shape = 'u32[]', space=smem, size = 0x4, offset = 0x4, fixed_abs, tag = 'smem constant byte address 0x4 - core index']
  #allocation1 [shape = 'u32[72,128]{1,0:T(1,128)}', space=vmem, size = 0x9000, scoped, tag = 'internal scratch']
  %s0 = inlined_call_operand.vmem [shape: f32[1,8,256], index: 0, kind: input, shape index: {}]
  %s1 = inlined_call_operand.vmem [shape: f32[256,64], index: 1, kind: input, shape index: {}]
  %s2 = inlined_call_operand.hbm [shape: f32[1,8,64], index: 2, kind: output, shape index: {}]
  %s3 = sld [smem:[#allocation0]]
  $region18: #{tpu_custom_call.1} parent=0
    _
  %s5 = ssub.s32 1, %s3
  %s6 = scalar_select 0, %s5, %s3
  $region1: #{tpu_custom_call.1} parent=0
    #allocation2 [shape = 'u8[4096]{0}', space=vmem, size = 0x1000, scoped, tag = 'output window, operand 0, single buffered']
    #allocation3 [shape = 's32[1]{0}', space=sflag, size = 0x4, scoped, tag = 'scoped memory for tpu_custom_call.1']
    %7 = vsyncpa [#allocation3], 0
    // Predicated region
    $region2: #{tpu_custom_call.1} parent=1 // pred_check
      _
    $region3: #{tpu_custom_call.1} parent=1 // pred_check_branch
      %9 = sbr.rel (0) target = $region5
    $region4: #{tpu_custom_call.1} parent=1 // pred_region
      _
    $region5: #{tpu_custom_call.1} parent=1 // pred_fallthru
      _
    // Predicated region
    $region6: #{tpu_custom_call.1} parent=1 // pred_check
      _
    $region7: #{tpu_custom_call.1} parent=1 // pred_check_branch
      %11 = sbr.rel (0) target = $region9
    $region8: #{tpu_custom_call.1} parent=1 // pred_region
      _
    $region9: #{tpu_custom_call.1} parent=1 // pred_fallthru
      _
    %v12 = vld [vmem:[%s0] sm:$0xff]
    %v13 = vld [vmem:[%s0 + $0x8] sm:$0xff]
    %v14 = vld [vmem:[%s1] sm:$0xff]
    %v15 = vld [vmem:[%s1 + $0x8] sm:$0xff]
    %v16 = vld [vmem:[%s1 + $0x10] sm:$0xff]
    %v17 = vld [vmem:[%s1 + $0x18] sm:$0xff]
    %v18 = vld [vmem:[%s1 + $0x20] sm:$0xff]
    %v19 = vld [vmem:[%s1 + $0x28] sm:$0xff]
    %v20 = vld [vmem:[%s1 + $0x30] sm:$0xff]
    %v21 = vld [vmem:[%s1 + $0x38] sm:$0xff]
    %v22 = vld [vmem:[%s1 + $0x40] sm:$0xff]
    %v23 = vld [vmem:[%s1 + $0x48] sm:$0xff]
    %v24 = vld [vmem:[%s1 + $0x50] sm:$0xff]
    %v25 = vld [vmem:[%s1 + $0x58] sm:$0xff]
    %v26 = vld [vmem:[%s1 + $0x60] sm:$0xff]
    %v27 = vld [vmem:[%s1 + $0x68] sm:$0xff]
    %v28 = vld [vmem:[%s1 + $0x70] sm:$0xff]
    %v29 = vld [vmem:[%s1 + $0x78] sm:$0xff]
    %v30 = vld [vmem:[%s1 + $0x80] sm:$0xff]
    %v31 = vld [vmem:[%s1 + $0x88] sm:$0xff]
    %v32 = vld [vmem:[%s1 + $0x90] sm:$0xff]
    %v33 = vld [vmem:[%s1 + $0x98] sm:$0xff]
    %v34 = vld [vmem:[%s1 + $0xa0] sm:$0xff]
    %v35 = vld [vmem:[%s1 + $0xa8] sm:$0xff]
    %v36 = vld [vmem:[%s1 + $0xb0] sm:$0xff]
    %v37 = vld [vmem:[%s1 + $0xb8] sm:$0xff]
    %v38 = vld [vmem:[%s1 + $0xc0] sm:$0xff]
    %v39 = vld [vmem:[%s1 + $0xc8] sm:$0xff]
    %v40 = vld [vmem:[%s1 + $0xd0] sm:$0xff]
    %v41 = vld [vmem:[%s1 + $0xd8] sm:$0xff]
    %v42 = vld [vmem:[%s1 + $0xe0] sm:$0xff]
    %v43 = vld [vmem:[%s1 + $0xe8] sm:$0xff]
    %v44 = vld [vmem:[%s1 + $0xf0] sm:$0xff]
    %v45 = vld [vmem:[%s1 + $0xf8] sm:$0xff]
    %46 = vmatpush.msra.mxu0 %v29
    %47 = vmatpush.msra.mxu0 %v28
    %48 = vmatpush.msra.mxu0 %v27
    %49 = vmatpush.msra.mxu0 %v26
    %50 = vmatpush.msra.mxu0 %v25
    %51 = vmatpush.msra.mxu0 %v24
    %52 = vmatpush.msra.mxu0 %v23
    %53 = vmatpush.msra.mxu0 %v22
    %54 = vmatpush.msra.mxu0 %v21
    %55 = vmatpush.msra.mxu0 %v20
    %56 = vmatpush.msra.mxu0 %v19
    %57 = vmatpush.msra.mxu0 %v18
    %58 = vmatpush.msra.mxu0 %v17
    %59 = vmatpush.msra.mxu0 %v16
    %60 = vmatpush.msra.mxu0 %v15
    %61 = vmatpush.msra.mxu0 %v14
    %62 = vmatmul.f32.gmra.mxu0 %v12
    %v63 = vpop.f32.mrf.mxu0
    %v64 = vadd.f32 0.0, %v63
    %65 = vdwg.mxu0
    %66 = vmatpush.msra.mxu0 %v45
    %67 = vmatpush.msra.mxu0 %v44
    %68 = vmatpush.msra.mxu0 %v43
    %69 = vmatpush.msra.mxu0 %v42
    %70 = vmatpush.msra.mxu0 %v41
    %71 = vmatpush.msra.mxu0 %v40
    %72 = vmatpush.msra.mxu0 %v39
    %73 = vmatpush.msra.mxu0 %v38
    %74 = vmatpush.msra.mxu0 %v37
    %75 = vmatpush.msra.mxu0 %v36
    %76 = vmatpush.msra.mxu0 %v35
    %77 = vmatpush.msra.mxu0 %v34
    %78 = vmatpush.msra.mxu0 %v33
    %79 = vmatpush.msra.mxu0 %v32
    %80 = vmatpush.msra.mxu0 %v31
    %81 = vmatpush.msra.mxu0 %v30
    %82 = vmatmul.f32.gmra.mxu0 %v13
    %v83 = vpop.f32.mrf.mxu0
    %v84 = vadd.f32 %v64, %v83
    %85 = vdwg.mxu0
    %vm86 = vcmask 523264
    %87 = vst.msk [vmem:[#allocation2] sm:$0xff] %vm86, %v84
    // Predicated region
    $region10: #{tpu_custom_call.1} parent=1 // pred_check
      _
    $region11: #{tpu_custom_call.1} parent=1 // pred_check_branch
      %89 = sbr.rel (0) target = $region13
    $region12: #{tpu_custom_call.1} parent=1 // pred_region
      %91 = vsyncadd [#allocation3], 0
      %s93 = sshll.u32 [#allocation2], 4
      %s94 = int_to_ptr.vmem [resolvable:$true] %s93
      %s95 = sshll.u32 %s2, 4
      %s96 = int_to_ptr.hbm [resolvable:$true] %s95
      %98 = dma.vmem_to_hbm [thread:$0]  %s94, 128, %s96, [#allocation3]
    $region13: #{tpu_custom_call.1} parent=1 // pred_fallthru
      _
    // Predicated region
    $region14: #{tpu_custom_call.1} parent=1 // pred_check
      _
    $region15: #{tpu_custom_call.1} parent=1 // pred_check_branch
      %100 = sbr.rel (0) target = $region17
    $region16: #{tpu_custom_call.1} parent=1 // pred_region
      %102 = dma.done [#allocation3], 128
    $region17: #{tpu_custom_call.1} parent=1 // pred_fallthru
      _
    %103 = vsyncpa [#allocation3], 1

</llo_original>
